<compile_context>
chip_gen: v6e
topology: v6e:2x2x1
jax: 0.10.0
libtpu: 0.0.40
codegen_flags: <defaults>
</compile_context>

<pallas_src>
import functools

import jax
import jax.numpy as jnp
from jax import lax
from jax.experimental import pallas as pl
from jax.experimental.pallas import tpu as pltpu


# ----------------------------------------------------------------------------
# Phase 1: x-projection kernel (fully parallel; uses both TCs on v7x).
# ----------------------------------------------------------------------------
def xproj_kernel(x_ref, wx_ref, b_ref, o_ref):
    o_ref[...] = (jnp.dot(x_ref[...].astype(wx_ref.dtype), wx_ref[...],
                          preferred_element_type=jnp.float32)
                  + b_ref[...]).astype(o_ref.dtype)


def _x_projection(x2d, wx, bias, bm):
    """x2d: (M, H) rows -> (M, 4H) f32 pre-activations (bias folded in)."""
    M, H = x2d.shape
    return pl.pallas_call(
        xproj_kernel,
        out_shape=jax.ShapeDtypeStruct((M, 4 * H), jnp.float32),
        grid_spec=pltpu.PrefetchScalarGridSpec(
            num_scalar_prefetch=0,
            grid=(M // bm,),
            in_specs=[
                pl.BlockSpec((bm, H), lambda i: (i, 0)),       # x rows (streamed)
                pl.BlockSpec((H, 4 * H), lambda i: (0, 0)),    # Wx (resident)
                pl.BlockSpec((1, 4 * H), lambda i: (0, 0)),    # folded bias
            ],
            out_specs=pl.BlockSpec((bm, 4 * H), lambda i: (i, 0)),
        ),
        compiler_params=pltpu.CompilerParams(
            dimension_semantics=("parallel",)),
    )(x2d, wx, bias)


# ----------------------------------------------------------------------------
# Phase 2: recurrent kernel.  One grid step == `unroll` LSTM timesteps.
# h/c live in f32 VMEM scratch; recurrent weights are VMEM-resident.
# ----------------------------------------------------------------------------
def lstm_rec_kernel(xp_ref, h0_ref, c0_ref, wh_ref, wc_ref, wco_ref,
                    hc_ref, h_sc, c_sc, *, unroll):
    @pl.when(pl.program_id(0) == 0)
    def _init():
        h_sc[...] = h0_ref[...].astype(jnp.float32)
        c_sc[...] = c0_ref[...].astype(jnp.float32)

    H = c_sc.shape[-1]
    mdt = wh_ref.dtype              # MXU operand dtype (f32 or bf16), f32 accumulation

    for u in range(unroll):         # static unroll over timesteps in this block
        h = h_sc[...]               # (B, H) f32 carry
        c = c_sc[...]               # (B, H) f32 carry
        gx = xp_ref[u]              # (B, 4H) f32 precomputed x path (bias folded)

        # c_{t-1} is ready before h_{t-1} (no dependence on the previous step's
        # wco dot / o-gate), so issue its dot first.
        gc = jnp.dot(c.astype(mdt), wc_ref[...],
                     preferred_element_type=jnp.float32)           # (B, 2H)
        gh = jnp.dot(h.astype(mdt), wh_ref[...],
                     preferred_element_type=jnp.float32)           # (B, 4H)
        g = gx + gh

        i_gate = jax.nn.sigmoid(g[:, 0 * H:1 * H] + gc[:, 0 * H:1 * H])
        f_gate = jax.nn.sigmoid(g[:, 1 * H:2 * H] + gc[:, 1 * H:2 * H])
        c_new = f_gate * c + i_gate * jnp.tanh(g[:, 2 * H:3 * H])

        # o-gate: x/h/bias part already in g; only the small wco dot depends on c_new.
        go = g[:, 3 * H:4 * H] + jnp.dot(c_new.astype(mdt), wco_ref[...],
                                         preferred_element_type=jnp.float32)
        h_new = jax.nn.sigmoid(go) * jnp.tanh(c_new)

        h_sc[...] = h_new
        c_sc[...] = c_new
        # Single lane-dense (B, 2H) output slab per step: [h | c].
        hc_ref[u, :, 0 * H:1 * H] = h_new.astype(hc_ref.dtype)
        hc_ref[u, :, 1 * H:2 * H] = c_new.astype(hc_ref.dtype)


# ----------------------------------------------------------------------------
# Wrappers
# ----------------------------------------------------------------------------
def lstm_sequence(xs, h0, c0, params, *, unroll=4):
    """Run the LSTM cell over a sequence. xs: (T, B, H); h0, c0: (B, H).

    Returns (hs, cs), each (T, B, H): the per-step hidden / cell states.
    Note: hs/cs are emitted in xs.dtype (the carried h/c stay f32 internally).
    """
    T, B, H = xs.shape
    wx, wh, wc, wco, bias = params

    u = max(1, min(unroll, T))
    Tp = pl.cdiv(T, u) * u
    if Tp != T:
        # Pad T to a multiple of the unroll factor; padded steps are sliced off.
        xs = jnp.concatenate([xs, jnp.zeros((Tp - T, B, H), xs.dtype)], axis=0)

    # Phase 1 (parallel): x pre-activations for the whole sequence, bias folded.
    xp = _x_projection(xs.reshape(Tp * B, H), wx, bias, bm=u * B)
    xp = xp.reshape(Tp, B, 4 * H)

    # Phase 2 (serial recurrence), U timesteps per grid step.
    # TODO(synk): for v7x's second TensorCore, add a leading "parallel" grid
    # axis over independent sequences / batch shards when available.
    const2 = lambda t: (0, 0)
    grid_spec = pltpu.PrefetchScalarGridSpec(
        num_scalar_prefetch=0,
        grid=(Tp // u,),
        in_specs=[
            pl.BlockSpec((u, B, 4 * H), lambda t: (t, 0, 0)),   # xp (streamed)
            pl.BlockSpec((B, H), const2),                        # h0 (resident)
            pl.BlockSpec((B, H), const2),                        # c0 (resident)
            pl.BlockSpec((H, 4 * H), const2),                    # Wh (resident)
            pl.BlockSpec((H, 2 * H), const2),                    # [wci|wcf]
            pl.BlockSpec((H, H), const2),                        # wco
        ],
        out_specs=pl.BlockSpec((u, B, 2 * H), lambda t: (t, 0, 0)),  # [h|c] slab
        scratch_shapes=[pltpu.VMEM((B, H), jnp.float32),        # h carry
                        pltpu.VMEM((B, H), jnp.float32)],       # c carry
    )

    hc = pl.pallas_call(
        functools.partial(lstm_rec_kernel, unroll=u),
        out_shape=jax.ShapeDtypeStruct((Tp, B, 2 * H), xs.dtype),
        grid_spec=grid_spec,
        compiler_params=pltpu.CompilerParams(
            dimension_semantics=("arbitrary",)),                 # true recurrence
    )(xp, h0, c0, wh, wc, wco)

    hs = hc[:T, :, :H]
    cs = hc[:T, :, H:]
    return hs, cs


def lstm_cell(x, h, c, params):
    """Single-step forward, matching the PyTorch module: (x, h, c) -> (h', c')."""
    hs, cs = lstm_sequence(x[None], h, c, params, unroll=1)
    return hs[0], cs[0]


# ----------------------------------------------------------------------------
# Parameter init / packing (PyTorch nn.Linear is y = x @ W.T + b; we store the
# transposed (in, out) weights directly).
# ----------------------------------------------------------------------------
_NAMES = ["Wxi", "Whi", "wci", "Wxf", "Whf", "wcf",
          "Wxc", "Whc", "Wxo", "Who", "wco"]


def init_raw_params(key, H):
    """Deterministic init mimicking nn.Linear (uniform +-1/sqrt(H)).
    Each weight is stored transposed, i.e. shape (in=H, out=H)."""
    bound = 1.0 / (H ** 0.5)
    keys = jax.random.split(key, 2 * len(_NAMES))
    W, b = {}, {}
    for idx, name in enumerate(_NAMES):
        W[name] = jax.random.uniform(keys[2 * idx], (H, H), jnp.float32,
                                     minval=-bound, maxval=bound)
        b[name] = jax.random.uniform(keys[2 * idx + 1], (H,), jnp.float32,
                                     minval=-bound, maxval=bound)
    return W, b


def pack_params(W, b, weight_dtype=jnp.float32):
    """Pack into kernel layout: Wx (H,4H), Wh (H,4H), [wci|wcf] (H,2H), wco (H,H),
    and one pre-folded (1, 4H) bias (all gate biases). Gate order: i, f, c, o."""
    wx = jnp.concatenate([W["Wxi"], W["Wxf"], W["Wxc"], W["Wxo"]],
                         axis=1).astype(weight_dtype)                       # (H, 4H)
    wh = jnp.concatenate([W["Whi"], W["Whf"], W["Whc"], W["Who"]],
                         axis=1).astype(weight_dtype)                       # (H, 4H)
    wc = jnp.concatenate([W["wci"], W["wcf"]], axis=1).astype(weight_dtype) # (H, 2H)
    wco = W["wco"].astype(weight_dtype)                                     # (H, H)
    bias = jnp.concatenate([
        b["Wxi"] + b["Whi"] + b["wci"],          # i
        b["Wxf"] + b["Whf"] + b["wcf"],          # f
        b["Wxc"] + b["Whc"],                     # c
        b["Wxo"] + b["Who"] + b["wco"],          # o (wco bias folded in)
    ])[None, :].astype(jnp.float32)              # (1, 4H)
    return wx, wh, wc, wco, bias


# ----------------------------------------------------------------------------
# Pure-JAX reference (matches the PyTorch forward exactly)
# ----------------------------------------------------------------------------
def reference_step(x, h, c, W, b, matmul_dtype=jnp.float32):
    def lin(name, v):
        return jnp.dot(v.astype(matmul_dtype), W[name].astype(matmul_dtype),
                       preferred_element_type=jnp.float32) + b[name]
    i = jax.nn.sigmoid(lin("Wxi", x) + lin("Whi", h) + lin("wci", c))
    f = jax.nn.sigmoid(lin("Wxf", x) + lin("Whf", h) + lin("wcf", c))
    c_new = f * c + i * jnp.tanh(lin("Wxc", x) + lin("Whc", h))
    o = jax.nn.sigmoid(lin("Wxo", x) + lin("Who", h) + lin("wco", c_new))
    h_new = o * jnp.tanh(c_new)
    return h_new, c_new


def reference_sequence(xs, h0, c0, W, b, matmul_dtype=jnp.float32):
    def step(carry, x):
        h, c = carry
        h, c = reference_step(x, h, c, W, b, matmul_dtype)
        return (h, c), (h, c)
    _, (hs, cs) = lax.scan(step, (h0, c0), xs)
    return hs, cs


# ----------------------------------------------------------------------------
if __name__ == "__main__":
    B, H, T = 8, 128, 8   # batch / n_hidden / sequence length ((8,128) vreg-aligned)
    key = jax.random.PRNGKey(0)
    kx, kh, kc, kp = jax.random.split(key, 4)
    xs = jax.random.normal(kx, (T, B, H), jnp.float32)
    h0 = jax.random.normal(kh, (B, H), jnp.float32)
    c0 = jax.random.normal(kc, (B, H), jnp.float32)

    W, b = init_raw_params(kp, H)

    # --- f32 weights: sequence + single-step, checked against the reference ---
    params_f32 = pack_params(W, b, jnp.float32)
    hs, cs = lstm_sequence(xs, h0, c0, params_f32, unroll=4)
    jax.block_until_ready((hs, cs))
    hs_ref, cs_ref = reference_sequence(xs, h0, c0, W, b)
    assert jnp.allclose(hs, hs_ref, atol=1e-3, rtol=1e-3), "h sequence mismatch"
    assert jnp.allclose(cs, cs_ref, atol=1e-3, rtol=1e-3), "c sequence mismatch"

    # Sequence length not divisible by the unroll factor (padding path).
    hs5, cs5 = lstm_sequence(xs[:5], h0, c0, params_f32, unroll=4)
    jax.block_until_ready((hs5, cs5))
    assert jnp.allclose(hs5, hs_ref[:5], atol=1e-3, rtol=1e-3), "padded h mismatch"
    assert jnp.allclose(cs5, cs_ref[:5], atol=1e-3, rtol=1e-3), "padded c mismatch"

    h1, c1 = lstm_cell(xs[0], h0, c0, params_f32)
    jax.block_until_ready((h1, c1))
    h1_ref, c1_ref = reference_step(xs[0], h0, c0, W, b)
    assert jnp.allclose(h1, h1_ref, atol=1e-3, rtol=1e-3), "single-step h mismatch"
    assert jnp.allclose(c1, c1_ref, atol=1e-3, rtol=1e-3), "single-step c mismatch"

    # --- bf16 weights / MXU operands, f32 accumulation + f32 epilogue ----------
    params_bf16 = pack_params(W, b, jnp.bfloat16)
    hs_b, cs_b = lstm_sequence(xs, h0, c0, params_bf16, unroll=4)
    jax.block_until_ready((hs_b, cs_b))
    hs_bref, cs_bref = reference_sequence(xs, h0, c0, W, b, matmul_dtype=jnp.bfloat16)
    assert jnp.allclose(hs_b, hs_bref, atol=2e-2, rtol=2e-2), "bf16 h mismatch"
    assert jnp.allclose(cs_b, cs_bref, atol=2e-2, rtol=2e-2), "bf16 c mismatch"

    print("KERNEL_OK")
</pallas_src>

<mosaic_0001>
module attributes {stable_mosaic.version = 11 : i64} {
  func.func @xproj_kernel(%arg0: i32, %arg1: memref<32x128xf32, #tpu.memory_space<vmem>>, %arg2: memref<128x512xf32, #tpu.memory_space<vmem>>, %arg3: memref<1x512xf32, #tpu.memory_space<vmem>>, %arg4: memref<32x512xf32, #tpu.memory_space<vmem>>) attributes {dimension_semantics = [#tpu.dimension_semantics<parallel>], iteration_bounds = array<i64: 2>, scalar_prefetch = 0 : i64, scratch_operands = 0 : i64, tpu.core_type = #tpu.core_type<tc>, window_params = [{transform_indices = @transform_0, window_bounds = array<i64: 32, 128>}, {pipeline_mode = #tpu.pipeline_mode<synchronous>, transform_indices = @transform_1, window_bounds = array<i64: 128, 512>}, {pipeline_mode = #tpu.pipeline_mode<synchronous>, transform_indices = @transform_2, window_bounds = array<i64: 1, 512>}, {transform_indices = @transform_3, window_bounds = array<i64: 32, 512>}]} {
    %c0 = arith.constant 0 : index
    %c0_0 = arith.constant 0 : index
    %0 = vector.load %arg1[%c0, %c0_0] : memref<32x128xf32, #tpu.memory_space<vmem>>, vector<32x128xf32>
    %c0_1 = arith.constant 0 : index
    %c0_2 = arith.constant 0 : index
    %1 = vector.load %arg2[%c0_1, %c0_2] : memref<128x512xf32, #tpu.memory_space<vmem>>, vector<128x512xf32>
    %cst = arith.constant dense<0.000000e+00> : vector<32x512xf32>
    %2 = tpu.matmul %0, %1, %cst {dimension_numbers = #tpu.dot_dimension_numbers<[1], [0], [0], [1], [0, 0, 1, 1], [], []>} : vector<32x128xf32>, vector<128x512xf32>, vector<32x512xf32> -> vector<32x512xf32>
    %c0_3 = arith.constant 0 : index
    %c0_4 = arith.constant 0 : index
    %3 = vector.load %arg3[%c0_3, %c0_4] : memref<1x512xf32, #tpu.memory_space<vmem>>, vector<1x512xf32>
    %4 = vector.broadcast %3 : vector<1x512xf32> to vector<32x512xf32>
    %5 = arith.addf %2, %4 : vector<32x512xf32>
    %c0_5 = arith.constant 0 : index
    %c0_6 = arith.constant 0 : index
    %6 = vector.load %arg4[%c0_5, %c0_6] : memref<32x512xf32, #tpu.memory_space<vmem>>, vector<32x512xf32>
    tpu.vector_store %arg4[%c0_5, %c0_6], %5 {strides = array<i32>} : memref<32x512xf32, #tpu.memory_space<vmem>>, vector<32x512xf32>,
    return
  }
  func.func @transform_0(%arg0: i32) -> (i32, i32) {
    %c0_i32 = arith.constant 0 : i32
    %c0_i32_0 = arith.constant 0 : i32
    return %arg0, %c0_i32 : i32, i32
  }
  func.func @transform_1(%arg0: i32) -> (i32, i32) {
    %c0_i32 = arith.constant 0 : i32
    %c0_i32_0 = arith.constant 0 : i32
    %c0_i32_1 = arith.constant 0 : i32
    return %c0_i32, %c0_i32_0 : i32, i32
  }
  func.func @transform_2(%arg0: i32) -> (i32, i32) {
    %c0_i32 = arith.constant 0 : i32
    %c0_i32_0 = arith.constant 0 : i32
    %c0_i32_1 = arith.constant 0 : i32
    return %c0_i32, %c0_i32_0 : i32, i32
  }
  func.func @transform_3(%arg0: i32) -> (i32, i32) {
    %c0_i32 = arith.constant 0 : i32
    %c0_i32_0 = arith.constant 0 : i32
    return %arg0, %c0_i32 : i32, i32
  }
}

</mosaic_0001>

<llo_original>
// kernel: tpu_custom_call.1
$region0: #{tpu_custom_call.1}
  #allocation0 [shape = 'u32[]', space=smem, size = 0x4, offset = 0x4, fixed_abs, tag = 'smem constant byte address 0x4 - core index']
  #allocation1 [shape = 'u32[144,128]{1,0:T(1,128)}', space=vmem, size = 0x12000, scoped, tag = 'internal scratch']
  %s0 = inlined_call_operand.hbm [shape: f32[64,128], index: 0, kind: input, shape index: {}]
  %s1 = inlined_call_operand.hbm [shape: f32[128,512], index: 1, kind: input, shape index: {}]
  %s2 = inlined_call_operand.hbm [shape: f32[1,512], index: 2, kind: input, shape index: {}]
  %s3 = inlined_call_operand.hbm [shape: f32[64,512], index: 3, kind: output, shape index: {}]
  %s4 = sld [smem:[#allocation0]]
  $region57: #{tpu_custom_call.1} parent=0
    _
  %s6 = ssub.s32 1, %s4
  %s7 = scalar_select 0, %s6, %s4
  $region1: #{tpu_custom_call.1} parent=0
    #allocation2 [shape = 'u8[32768]{0}', space=vmem, size = 0x8000, scoped, tag = 'input window, operand 0']
    #allocation3 [shape = 's32[2]{0}', space=sflag, size = 0x8, scoped, tag = 'scoped memory for tpu_custom_call.1']
    #allocation4 [shape = 's32[2]{0}', space=sflag, size = 0x8, scoped, tag = 'scoped memory for tpu_custom_call.1']
    #allocation5 [shape = 'u8[262144]{0}', space=vmem, size = 0x40000, scoped, tag = 'input window, operand 1, single buffered']
    #allocation6 [shape = 's32[1]{0}', space=sflag, size = 0x4, scoped, tag = 'scoped memory for tpu_custom_call.1']
    #allocation7 [shape = 'u8[2048]{0}', space=vmem, size = 0x800, scoped, tag = 'input window, operand 2, single buffered']
    #allocation8 [shape = 'u8[131072]{0}', space=vmem, size = 0x20000, scoped, tag = 'output window, operand 0']
    %8 = vsyncpa [#allocation3], 0
    %s9 = scalar_lea.sflag [#allocation3], 1
    %10 = vsyncpa %s9, 0
    %11 = vsyncpa [#allocation6], 0
    %12 = vsyncpa [#allocation4], 0
    %s13 = scalar_lea.sflag [#allocation4], 1
    %14 = vsyncpa %s13, 0
    loop: start=0, step=1, limit=4
    $region2: #{tpu_custom_call.1} parent=1 // loop_pre_header
      _
    $region3: #{tpu_custom_call.1} parent=1 // loop_header
      %s16 = sphi 0, %s20
      %p17 = scmp.ge.s32.totalorder %s16, 4
      %s26 = sphi 0, %s28
      %s29 = sphi 0, %s26
      %s30 = sphi 0, %s29
      %s46 = sphi 0, %s30
      %s50 = sphi 0, %s50
      %s52 = sphi 0, %s50
      %s53 = sphi 0, %s52
      %s67 = sphi 0, %s53
      %s71 = sphi 0, %s71
      %s73 = sphi 0, %s71
      %s74 = sphi 0, %s73
      %s88 = sphi 0, %s74
      %s94 = sphi 0, %s96
      %s97 = sphi 0, %s94
      %s98 = sphi 0, %s97
      %s114 = sphi 0, %s98
    $region4: #{tpu_custom_call.1} parent=1 // loop_header_branch
      %19 = sbr.rel (%p17) target = $region8
    $region5: #{tpu_custom_call.1} parent=1 // loop_body
      %s21 = ssub.s32 %s16, 1
      %s22 = ssub.s32 %s16, 2
      %s23 = sadd.s32 %s16, 1
      %s24 = ssub.s32 %s16, %s23
      %p25 = scmp.eq.s32.totalorder %s24, 0
      %s27 = sadd.s32 %s26, 1
      %s28 = scalar_select %p25, %s26, %s27
      %p31 = pneg %p25
      %p32 = scmp.eq.s32.totalorder %s16, 1
      %p33 = por %p31, %p32
      %p34 = scmp.ne.s32.totalorder %s26, %s29
      %p35 = scmp.eq.s32.totalorder %s16, 0
      %p36 = por %p34, %p35
      %p37 = scmp.ne.s32.totalorder %s26, %s29
      %p38 = scmp.eq.s32.totalorder %s21, 1
      %p39 = por %p37, %p38
      %p40 = scmp.ne.s32.totalorder %s29, %s30
      %p41 = scmp.eq.s32.totalorder %s21, 0
      %p42 = por %p40, %p41
      %p43 = scmp.ne.s32.totalorder %s29, %s30
      %p44 = scmp.eq.s32.totalorder %s22, 1
      %p45 = por %p43, %p44
      %p47 = scmp.ne.s32.totalorder %s30, %s46
      %p48 = scmp.eq.s32.totalorder %s22, 0
      %p49 = por %p47, %p48
      %s51 = sadd.s32 %s50, 1
      %p54 = scmp.eq.s32.totalorder %s16, 1
      %p55 = scmp.ne.s32.totalorder %s50, %s52
      %p56 = scmp.eq.s32.totalorder %s16, 0
      %p57 = por %p55, %p56
      %p58 = scmp.ne.s32.totalorder %s50, %s52
      %p59 = scmp.eq.s32.totalorder %s21, 1
      %p60 = por %p58, %p59
      %p61 = scmp.ne.s32.totalorder %s52, %s53
      %p62 = scmp.eq.s32.totalorder %s21, 0
      %p63 = por %p61, %p62
      %p64 = scmp.ne.s32.totalorder %s52, %s53
      %p65 = scmp.eq.s32.totalorder %s22, 1
      %p66 = por %p64, %p65
      %p68 = scmp.ne.s32.totalorder %s53, %s67
      %p69 = scmp.eq.s32.totalorder %s22, 0
      %p70 = por %p68, %p69
      %s72 = sadd.s32 %s71, 1
      %p75 = scmp.eq.s32.totalorder %s16, 1
      %p76 = scmp.ne.s32.totalorder %s71, %s73
      %p77 = scmp.eq.s32.totalorder %s16, 0
      %p78 = por %p76, %p77
      %p79 = scmp.ne.s32.totalorder %s71, %s73
      %p80 = scmp.eq.s32.totalorder %s21, 1
      %p81 = por %p79, %p80
      %p82 = scmp.ne.s32.totalorder %s73, %s74
      %p83 = scmp.eq.s32.totalorder %s21, 0
      %p84 = por %p82, %p83
      %p85 = scmp.ne.s32.totalorder %s73, %s74
      %p86 = scmp.eq.s32.totalorder %s22, 1
      %p87 = por %p85, %p86
      %p89 = scmp.ne.s32.totalorder %s74, %s88
      %p90 = scmp.eq.s32.totalorder %s22, 0
      %p91 = por %p89, %p90
      %s92 = ssub.s32 %s16, %s23
      %p93 = scmp.eq.s32.totalorder %s92, 0
      %s95 = sadd.s32 %s94, 1
      %s96 = scalar_select %p93, %s94, %s95
      %p99 = pneg %p93
      %p100 = scmp.eq.s32.totalorder %s16, 1
      %p101 = por %p99, %p100
      %p102 = scmp.ne.s32.totalorder %s94, %s97
      %p103 = scmp.eq.s32.totalorder %s16, 0
      %p104 = por %p102, %p103
      %p105 = scmp.ne.s32.totalorder %s94, %s97
      %p106 = scmp.eq.s32.totalorder %s21, 1
      %p107 = por %p105, %p106
      %p108 = scmp.ne.s32.totalorder %s97, %s98
      %p109 = scmp.eq.s32.totalorder %s21, 0
      %p110 = por %p108, %p109
      %p111 = scmp.ne.s32.totalorder %s97, %s98
      %p112 = scmp.eq.s32.totalorder %s22, 1
      %p113 = por %p111, %p112
      %p115 = scmp.ne.s32.totalorder %s98, %s114
      %p116 = scmp.eq.s32.totalorder %s22, 0
      %p117 = por %p115, %p116
      %p118 = scmp.le.s32.totalorder 1, %s16
      %p119 = scmp.lt.s32.totalorder %s16, 3
      %p120 = pnand %p118, %p119
      %p121 = pneg %p120
      // Predicated region
      $region9: #{tpu_custom_call.1} parent=5 // pred_check
        _
      $region10: #{tpu_custom_call.1} parent=5 // pred_check_branch
        %123 = sbr.rel (%p120) target = $region12
      $region11: #{tpu_custom_call.1} parent=5 // pred_region
        %s124 = ssub.s32 %s16, 1
        // Predicated region
        $region13: #{tpu_custom_call.1} parent=11 // pred_check
          %p125 = pneg %p63
        $region14: #{tpu_custom_call.1} parent=11 // pred_check_branch
          %127 = sbr.rel (%p125) target = $region16
        $region15: #{tpu_custom_call.1} parent=11 // pred_region
          %s129 = ssub.s32 8192, 8192
          %130 = vsyncadd [#allocation6], %s129
          %s131 = sshll.u32 [#allocation5], 4
          %s132 = int_to_ptr.vmem [resolvable:$true] %s131
          %137 = dma.hbm_to_vmem [thread:$0]  %s1, 8192, %s132, [#allocation6], 512, 512, 32
        $region16: #{tpu_custom_call.1} parent=11 // pred_fallthru
          _
        // Predicated region
        $region17: #{tpu_custom_call.1} parent=11 // pred_check
          %p138 = pneg %p84
        $region18: #{tpu_custom_call.1} parent=11 // pred_check_branch
          %140 = sbr.rel (%p138) target = $region20
        $region19: #{tpu_custom_call.1} parent=11 // pred_region
          %s142 = ssub.s32 64, 64
          %143 = vsyncadd [#allocation6], %s142
          %s145 = sshll.u32 [#allocation7], 4
          %s146 = int_to_ptr.vmem [resolvable:$true] %s145
          %148 = dma.hbm_to_vmem [thread:$0]  %s2, 64, %s146, [#allocation6]
        $region20: #{tpu_custom_call.1} parent=11 // pred_fallthru
          _
      $region12: #{tpu_custom_call.1} parent=5 // pred_fallthru
        _
      %p149 = scmp.lt.s32.totalorder %s16, 2
      // Predicated region
      $region21: #{tpu_custom_call.1} parent=5 // pred_check
        %p150 = pneg %p149
      $region22: #{tpu_custom_call.1} parent=5 // pred_check_branch
        %152 = sbr.rel (%p150) target = $region24
      $region23: #{tpu_custom_call.1} parent=5 // pred_region
        // Predicated region
        $region25: #{tpu_custom_call.1} parent=23 // pred_check
          %p153 = pneg %p36
        $region26: #{tpu_custom_call.1} parent=23 // pred_check_branch
          %155 = sbr.rel (%p153) target = $region28
        $region27: #{tpu_custom_call.1} parent=23 // pred_region
          %s156 = sand.u32 %s26, 1
          %s157 = scalar_lea.sflag [#allocation3], %s156
          %s158 = sand.u32 %s26, 1
          %s159 = smul.addr %s158, 32
          %s160 = scalar_lea.vmem [#allocation2], %s159
          %s161 = smul.u32 4, %s16
          %s163 = ssub.s32 512, 512
          %164 = vsyncadd %s157, %s163
          %s165 = smul.addr %s161, 128
          %s166 = scalar_lea.hbm %s0, %s165
          %s167 = sshll.u32 %s160, 4
          %s168 = int_to_ptr.vmem [resolvable:$true] %s167
          %173 = dma.hbm_to_vmem [thread:$0]  %s166, 512, %s168, %s157, 128, 128, 8
        $region28: #{tpu_custom_call.1} parent=23 // pred_fallthru
          _
      $region24: #{tpu_custom_call.1} parent=5 // pred_fallthru
        _
      %p174 = scmp.le.s32.totalorder 1, %s16
      %p175 = scmp.lt.s32.totalorder %s16, 3
      %p176 = pnand %p174, %p175
      %p177 = pneg %p176
      // Predicated region
      $region29: #{tpu_custom_call.1} parent=5 // pred_check
        _
      $region30: #{tpu_custom_call.1} parent=5 // pred_check_branch
        %179 = sbr.rel (%p176) target = $region32
      $region31: #{tpu_custom_call.1} parent=5 // pred_region
        %s180 = ssub.s32 %s16, 1
        %s181 = sand.u32 %s29, 1
        %s182 = scalar_lea.sflag [#allocation3], %s181
        %s183 = sand.u32 %s29, 1
        %s184 = smul.addr %s183, 32
        %s185 = scalar_lea.vmem [#allocation2], %s184
        // Predicated region
        $region33: #{tpu_custom_call.1} parent=31 // pred_check
          %p186 = pneg %p42
        $region34: #{tpu_custom_call.1} parent=31 // pred_check_branch
          %188 = sbr.rel (%p186) target = $region36
        $region35: #{tpu_custom_call.1} parent=31 // pred_region
          %189 = dma.done %s182, 512
        $region36: #{tpu_custom_call.1} parent=31 // pred_fallthru
          _
        // Predicated region
        $region37: #{tpu_custom_call.1} parent=31 // pred_check
          %p190 = pneg %p63
        $region38: #{tpu_custom_call.1} parent=31 // pred_check_branch
          %192 = sbr.rel (%p190) target = $region40
        $region39: #{tpu_custom_call.1} parent=31 // pred_region
          %193 = dma.done [#allocation6], 8192
        $region40: #{tpu_custom_call.1} parent=31 // pred_fallthru
          _
        // Predicated region
        $region41: #{tpu_custom_call.1} parent=31 // pred_check
          %p194 = pneg %p84
        $region42: #{tpu_custom_call.1} parent=31 // pred_check_branch
          %196 = sbr.rel (%p194) target = $region44
        $region43: #{tpu_custom_call.1} parent=31 // pred_region
          %197 = dma.done [#allocation6], 64
        $region44: #{tpu_custom_call.1} parent=31 // pred_fallthru
          _
        %s198 = sand.u32 %s29, 1
        %s199 = scalar_lea.sflag [#allocation3], %s198
        %s200 = sand.u32 %s29, 1
        %s201 = smul.addr %s200, 32
        %s202 = scalar_lea.vmem [#allocation2], %s201
        %p203 = pneg %p42
        %p204 = pneg %p39
        %p205 = pneg %p63
        %p206 = pneg %p60
        %p207 = pneg %p84
        %p208 = pneg %p81
        %p209 = pneg %p110
        %p210 = pneg %p107
        %s211 = sand.u32 %s97, 1
        %s212 = scalar_lea.sflag [#allocation4], %s211
        %s213 = sand.u32 %s97, 1
        %s214 = smul.addr %s213, 128
        %s215 = scalar_lea.vmem [#allocation8], %s214
        %s216 = smul.u32 4, %s21
        %s217 = smul.u32 4, %s21
        %v218 = vld [vmem:[%s185] sm:$0xff]
        %v219 = vld [vmem:[%s185 + $0x8] sm:$0xff]
        %v220 = vld [vmem:[%s185 + $0x10] sm:$0xff]
        %v221 = vld [vmem:[%s185 + $0x18] sm:$0xff]
        %v222 = vld [vmem:[#allocation5] sm:$0xff]
        %v223 = vld [vmem:[#allocation5 + $0x8] sm:$0xff]
        %v224 = vld [vmem:[#allocation5 + $0x10] sm:$0xff]
        %v225 = vld [vmem:[#allocation5 + $0x18] sm:$0xff]
        %v226 = vld [vmem:[#allocation5 + $0x20] sm:$0xff]
        %v227 = vld [vmem:[#allocation5 + $0x28] sm:$0xff]
        %v228 = vld [vmem:[#allocation5 + $0x30] sm:$0xff]
        %v229 = vld [vmem:[#allocation5 + $0x38] sm:$0xff]
        %v230 = vld [vmem:[#allocation5 + $0x40] sm:$0xff]
        %v231 = vld [vmem:[#allocation5 + $0x48] sm:$0xff]
        %v232 = vld [vmem:[#allocation5 + $0x50] sm:$0xff]
        %v233 = vld [vmem:[#allocation5 + $0x58] sm:$0xff]
        %v234 = vld [vmem:[#allocation5 + $0x60] sm:$0xff]
        %v235 = vld [vmem:[#allocation5 + $0x68] sm:$0xff]
        %v236 = vld [vmem:[#allocation5 + $0x70] sm:$0xff]
        %v237 = vld [vmem:[#allocation5 + $0x78] sm:$0xff]
        %v238 = vld [vmem:[#allocation5 + $0x80] sm:$0xff]
        %v239 = vld [vmem:[#allocation5 + $0x88] sm:$0xff]
        %v240 = vld [vmem:[#allocation5 + $0x90] sm:$0xff]
        %v241 = vld [vmem:[#allocation5 + $0x98] sm:$0xff]
        %v242 = vld [vmem:[#allocation5 + $0xa0] sm:$0xff]
        %v243 = vld [vmem:[#allocation5 + $0xa8] sm:$0xff]
        %v244 = vld [vmem:[#allocation5 + $0xb0] sm:$0xff]
        %v245 = vld [vmem:[#allocation5 + $0xb8] sm:$0xff]
        %v246 = vld [vmem:[#allocation5 + $0xc0] sm:$0xff]
        %v247 = vld [vmem:[#allocation5 + $0xc8] sm:$0xff]
        %v248 = vld [vmem:[#allocation5 + $0xd0] sm:$0xff]
        %v249 = vld [vmem:[#allocation5 + $0xd8] sm:$0xff]
        %v250 = vld [vmem:[#allocation5 + $0xe0] sm:$0xff]
        %v251 = vld [vmem:[#allocation5 + $0xe8] sm:$0xff]
        %v252 = vld [vmem:[#allocation5 + $0xf0] sm:$0xff]
        %v253 = vld [vmem:[#allocation5 + $0xf8] sm:$0xff]
        %v254 = vld [vmem:[#allocation5 + $0x100] sm:$0xff]
        %v255 = vld [vmem:[#allocation5 + $0x108] sm:$0xff]
        %v256 = vld [vmem:[#allocation5 + $0x110] sm:$0xff]
        %v257 = vld [vmem:[#allocation5 + $0x118] sm:$0xff]
        %v258 = vld [vmem:[#allocation5 + $0x120] sm:$0xff]
        %v259 = vld [vmem:[#allocation5 + $0x128] sm:$0xff]
        %v260 = vld [vmem:[#allocation5 + $0x130] sm:$0xff]
        %v261 = vld [vmem:[#allocation5 + $0x138] sm:$0xff]
        %v262 = vld [vmem:[#allocation5 + $0x140] sm:$0xff]
        %v263 = vld [vmem:[#allocation5 + $0x148] sm:$0xff]
        %v264 = vld [vmem:[#allocation5 + $0x150] sm:$0xff]
        %v265 = vld [vmem:[#allocation5 + $0x158] sm:$0xff]
        %v266 = vld [vmem:[#allocation5 + $0x160] sm:$0xff]
        %v267 = vld [vmem:[#allocation5 + $0x168] sm:$0xff]
        %v268 = vld [vmem:[#allocation5 + $0x170] sm:$0xff]
        %v269 = vld [vmem:[#allocation5 + $0x178] sm:$0xff]
        %v270 = vld [vmem:[#allocation5 + $0x180] sm:$0xff]
        %v271 = vld [vmem:[#allocation5 + $0x188] sm:$0xff]
        %v272 = vld [vmem:[#allocation5 + $0x190] sm:$0xff]
        %v273 = vld [vmem:[#allocation5 + $0x198] sm:$0xff]
        %v274 = vld [vmem:[#allocation5 + $0x1a0] sm:$0xff]
        %v275 = vld [vmem:[#allocation5 + $0x1a8] sm:$0xff]
        %v276 = vld [vmem:[#allocation5 + $0x1b0] sm:$0xff]
        %v277 = vld [vmem:[#allocation5 + $0x1b8] sm:$0xff]
        %v278 = vld [vmem:[#allocation5 + $0x1c0] sm:$0xff]
        %v279 = vld [vmem:[#allocation5 + $0x1c8] sm:$0xff]
        %v280 = vld [vmem:[#allocation5 + $0x1d0] sm:$0xff]
        %v281 = vld [vmem:[#allocation5 + $0x1d8] sm:$0xff]
        %v282 = vld [vmem:[#allocation5 + $0x1e0] sm:$0xff]
        %v283 = vld [vmem:[#allocation5 + $0x1e8] sm:$0xff]
        %v284 = vld [vmem:[#allocation5 + $0x1f0] sm:$0xff]
        %v285 = vld [vmem:[#allocation5 + $0x1f8] sm:$0xff]
        %v286 = vld [vmem:[#allocation7] sm:$0xf]
        %v288 = vlaneseq
        %v289 = vshrl.u32 %v288, 7
        %v290 = vsub.s32 0, %v289
        %v291 = vrot.slane %v286, %v290
        %v292 = vlaneseq
        %v293 = vshrl.u32 %v292, 7
        %v294 = vsub.s32 1, %v293
        %v295 = vrot.slane %v286, %v294
        %v296 = vlaneseq
        %v297 = vshrl.u32 %v296, 7
        %v298 = vsub.s32 2, %v297
        %v299 = vrot.slane %v286, %v298
        %v300 = vlaneseq
        %v301 = vshrl.u32 %v300, 7
        %v302 = vsub.s32 3, %v301
        %v303 = vrot.slane %v286, %v302
        %308 = vmatprep.subr.mxu0 %v283
        %309 = vmatpush1.msra.mxu0 %v282
        %310 = vmatprep.subr.mxu0 %v279
        %311 = vmatpush1.msra.mxu0 %v278
        %312 = vmatprep.subr.mxu0 %v275
        %313 = vmatpush1.msra.mxu0 %v274
        %314 = vmatprep.subr.mxu0 %v271
        %315 = vmatpush1.msra.mxu0 %v270
        %316 = vmatprep.subr.mxu0 %v267
        %317 = vmatpush1.msra.mxu0 %v266
        %318 = vmatprep.subr.mxu0 %v263
        %319 = vmatpush1.msra.mxu0 %v262
        %320 = vmatprep.subr.mxu0 %v259
        %321 = vmatpush1.msra.mxu0 %v258
        %322 = vmatprep.subr.mxu0 %v255
        %323 = vmatpush1.msra.mxu0 %v254
        %324 = vmatprep.subr.mxu0 %v251
        %325 = vmatpush1.msra.mxu0 %v250
        %326 = vmatprep.subr.mxu0 %v247
        %327 = vmatpush1.msra.mxu0 %v246
        %328 = vmatprep.subr.mxu0 %v243
        %329 = vmatpush1.msra.mxu0 %v242
        %330 = vmatprep.subr.mxu0 %v239
        %331 = vmatpush1.msra.mxu0 %v238
        %332 = vmatprep.subr.mxu0 %v235
        %333 = vmatpush1.msra.mxu0 %v234
        %334 = vmatprep.subr.mxu0 %v231
        %335 = vmatpush1.msra.mxu0 %v230
        %336 = vmatprep.subr.mxu0 %v227
        %337 = vmatpush1.msra.mxu0 %v226
        %338 = vmatprep.subr.mxu0 %v223
        %339 = vmatpush1.msra.mxu0 %v222
        %340 = vmatprep.subr.mxu0 0.0
        %341 = vmatpush2.msra.mxu0 0.0
        %342 = vmatprep.subr.mxu0 0.0
        %343 = vmatpush2.msra.mxu0 0.0
        %344 = vmatprep.subr.mxu0 0.0
        %345 = vmatpush2.msra.mxu0 0.0
        %346 = vmatprep.subr.mxu0 0.0
        %347 = vmatpush2.msra.mxu0 0.0
        %348 = vmatprep.subr.mxu0 0.0
        %349 = vmatpush2.msra.mxu0 0.0
        %350 = vmatprep.subr.mxu0 0.0
        %351 = vmatpush2.msra.mxu0 0.0
        %352 = vmatprep.subr.mxu0 0.0
        %353 = vmatpush2.msra.mxu0 0.0
        %354 = vmatprep.subr.mxu0 0.0
        %355 = vmatpush2.msra.mxu0 0.0
        %356 = vmatprep.subr.mxu0 0.0
        %357 = vmatpush2.msra.mxu0 0.0
        %358 = vmatprep.subr.mxu0 0.0
        %359 = vmatpush2.msra.mxu0 0.0
        %360 = vmatprep.subr.mxu0 0.0
        %361 = vmatpush2.msra.mxu0 0.0
        %362 = vmatprep.subr.mxu0 0.0
        %363 = vmatpush2.msra.mxu0 0.0
        %364 = vmatprep.subr.mxu0 0.0
        %365 = vmatpush2.msra.mxu0 0.0
        %366 = vmatprep.subr.mxu0 0.0
        %367 = vmatpush2.msra.mxu0 0.0
        %368 = vmatprep.subr.mxu0 0.0
        %369 = vmatpush2.msra.mxu0 0.0
        %370 = vmatprep.subr.mxu0 0.0
        %371 = vmatpush2.msra.mxu0 0.0
        %372 = vmatprep.mubr.f32.mxu0 0.0
        %373 = vmatmul.mubr.f32.gmra.mxu0 %v218
        %v374 = vpop.f32.mrf.mxu0
        %v375 = vadd.f32 %v291, %v374
        %v376 = vpop.f32.mrf.mxu0
        %v377 = vadd.f32 %v295, %v376
        %378 = vmatprep.mubr.f32.mxu0 0.0
        %379 = vmatmul.mubr.f32.gmra.mxu0 %v219
        %v380 = vpop.f32.mrf.mxu0
        %v381 = vadd.f32 %v291, %v380
        %v382 = vpop.f32.mrf.mxu0
        %v383 = vadd.f32 %v295, %v382
        %384 = vmatprep.mubr.f32.mxu0 0.0
        %385 = vmatmul.mubr.f32.gmra.mxu0 %v220
        %v386 = vpop.f32.mrf.mxu0
        %v387 = vadd.f32 %v291, %v386
        %v388 = vpop.f32.mrf.mxu0
        %v389 = vadd.f32 %v295, %v388
        %390 = vmatprep.mubr.f32.mxu0 0.0
        %391 = vmatmul.mubr.f32.gmra.mxu0 %v221
        %v392 = vpop.f32.mrf.mxu0
        %v393 = vadd.f32 %v291, %v392
        %v394 = vpop.f32.mrf.mxu0
        %v395 = vadd.f32 %v295, %v394
        %396 = vdwg.mxu0
        %397 = vmatprep.subr.mxu0 %v285
        %398 = vmatpush1.msra.mxu0 %v284
        %399 = vmatprep.subr.mxu0 %v281
        %400 = vmatpush1.msra.mxu0 %v280
        %401 = vmatprep.subr.mxu0 %v277
        %402 = vmatpush1.msra.mxu0 %v276
        %403 = vmatprep.subr.mxu0 %v273
        %404 = vmatpush1.msra.mxu0 %v272
        %405 = vmatprep.subr.mxu0 %v269
        %406 = vmatpush1.msra.mxu0 %v268
        %407 = vmatprep.subr.mxu0 %v265
        %408 = vmatpush1.msra.mxu0 %v264
        %409 = vmatprep.subr.mxu0 %v261
        %410 = vmatpush1.msra.mxu0 %v260
        %411 = vmatprep.subr.mxu0 %v257
        %412 = vmatpush1.msra.mxu0 %v256
        %413 = vmatprep.subr.mxu0 %v253
        %414 = vmatpush1.msra.mxu0 %v252
        %415 = vmatprep.subr.mxu0 %v249
        %416 = vmatpush1.msra.mxu0 %v248
        %417 = vmatprep.subr.mxu0 %v245
        %418 = vmatpush1.msra.mxu0 %v244
        %419 = vmatprep.subr.mxu0 %v241
        %420 = vmatpush1.msra.mxu0 %v240
        %421 = vmatprep.subr.mxu0 %v237
        %422 = vmatpush1.msra.mxu0 %v236
        %423 = vmatprep.subr.mxu0 %v233
        %424 = vmatpush1.msra.mxu0 %v232
        %425 = vmatprep.subr.mxu0 %v229
        %426 = vmatpush1.msra.mxu0 %v228
        %427 = vmatprep.subr.mxu0 %v225
        %428 = vmatpush1.msra.mxu0 %v224
        %429 = vmatprep.subr.mxu0 0.0
        %430 = vmatpush2.msra.mxu0 0.0
        %431 = vmatprep.subr.mxu0 0.0
        %432 = vmatpush2.msra.mxu0 0.0
        %433 = vmatprep.subr.mxu0 0.0
        %434 = vmatpush2.msra.mxu0 0.0
        %435 = vmatprep.subr.mxu0 0.0
        %436 = vmatpush2.msra.mxu0 0.0
        %437 = vmatprep.subr.mxu0 0.0
        %438 = vmatpush2.msra.mxu0 0.0
        %439 = vmatprep.subr.mxu0 0.0
        %440 = vmatpush2.msra.mxu0 0.0
        %441 = vmatprep.subr.mxu0 0.0
        %442 = vmatpush2.msra.mxu0 0.0
        %443 = vmatprep.subr.mxu0 0.0
        %444 = vmatpush2.msra.mxu0 0.0
        %445 = vmatprep.subr.mxu0 0.0
        %446 = vmatpush2.msra.mxu0 0.0
        %447 = vmatprep.subr.mxu0 0.0
        %448 = vmatpush2.msra.mxu0 0.0
        %449 = vmatprep.subr.mxu0 0.0
        %450 = vmatpush2.msra.mxu0 0.0
        %451 = vmatprep.subr.mxu0 0.0
        %452 = vmatpush2.msra.mxu0 0.0
        %453 = vmatprep.subr.mxu0 0.0
        %454 = vmatpush2.msra.mxu0 0.0
        %455 = vmatprep.subr.mxu0 0.0
        %456 = vmatpush2.msra.mxu0 0.0
        %457 = vmatprep.subr.mxu0 0.0
        %458 = vmatpush2.msra.mxu0 0.0
        %459 = vmatprep.subr.mxu0 0.0
        %460 = vmatpush2.msra.mxu0 0.0
        %461 = vmatprep.mubr.f32.mxu0 0.0
        %462 = vmatmul.mubr.f32.gmra.mxu0 %v218
        %v463 = vpop.f32.mrf.mxu0
        %v464 = vadd.f32 %v299, %v463
        %v465 = vpop.f32.mrf.mxu0
        %v466 = vadd.f32 %v303, %v465
        %467 = vmatprep.mubr.f32.mxu0 0.0
        %468 = vmatmul.mubr.f32.gmra.mxu0 %v219
        %v469 = vpop.f32.mrf.mxu0
        %v470 = vadd.f32 %v299, %v469
        %v471 = vpop.f32.mrf.mxu0
        %v472 = vadd.f32 %v303, %v471
        %473 = vmatprep.mubr.f32.mxu0 0.0
        %474 = vmatmul.mubr.f32.gmra.mxu0 %v220
        %v475 = vpop.f32.mrf.mxu0
        %v476 = vadd.f32 %v299, %v475
        %v477 = vpop.f32.mrf.mxu0
        %v478 = vadd.f32 %v303, %v477
        %479 = vmatprep.mubr.f32.mxu0 0.0
        %480 = vmatmul.mubr.f32.gmra.mxu0 %v221
        %v481 = vpop.f32.mrf.mxu0
        %v482 = vadd.f32 %v299, %v481
        %v483 = vpop.f32.mrf.mxu0
        %v484 = vadd.f32 %v303, %v483
        %485 = vdwg.mxu0
        %486 = vst [vmem:[%s215] sm:$0xff] %v375
        %487 = vst [vmem:[%s215 + $0x8] sm:$0xff] %v377
        %488 = vst [vmem:[%s215 + $0x10] sm:$0xff] %v464
        %489 = vst [vmem:[%s215 + $0x18] sm:$0xff] %v466
        %490 = vst [vmem:[%s215 + $0x20] sm:$0xff] %v381
        %491 = vst [vmem:[%s215 + $0x28] sm:$0xff] %v383
        %492 = vst [vmem:[%s215 + $0x30] sm:$0xff] %v470
        %493 = vst [vmem:[%s215 + $0x38] sm:$0xff] %v472
        %494 = vst [vmem:[%s215 + $0x40] sm:$0xff] %v387
        %495 = vst [vmem:[%s215 + $0x48] sm:$0xff] %v389
        %496 = vst [vmem:[%s215 + $0x50] sm:$0xff] %v476
        %497 = vst [vmem:[%s215 + $0x58] sm:$0xff] %v478
        %498 = vst [vmem:[%s215 + $0x60] sm:$0xff] %v393
        %499 = vst [vmem:[%s215 + $0x68] sm:$0xff] %v395
        %500 = vst [vmem:[%s215 + $0x70] sm:$0xff] %v482
        %501 = vst [vmem:[%s215 + $0x78] sm:$0xff] %v484
        %s502 = sand.u32 %s97, 1
        %s503 = scalar_lea.sflag [#allocation4], %s502
        %s504 = sand.u32 %s97, 1
        %s505 = smul.addr %s504, 128
        %s506 = scalar_lea.vmem [#allocation8], %s505
        // Predicated region
        $region45: #{tpu_custom_call.1} parent=31 // pred_check
          %p507 = pneg %p107
        $region46: #{tpu_custom_call.1} parent=31 // pred_check_branch
          %509 = sbr.rel (%p507) target = $region48
        $region47: #{tpu_custom_call.1} parent=31 // pred_region
          %s510 = smul.u32 4, %s21
          %s512 = ssub.s32 2048, 2048
          %513 = vsyncadd %s503, %s512
          %s514 = smul.addr %s510, 4
          %s515 = smul.addr %s514, 128
          %s516 = scalar_lea.hbm %s3, %s515
          %s517 = sshll.u32 %s506, 4
          %s518 = int_to_ptr.vmem [resolvable:$true] %s517
          %523 = dma.vmem_to_hbm [thread:$0]  %s518, 2048, %s516, %s503, 512, 512, 32
        $region48: #{tpu_custom_call.1} parent=31 // pred_fallthru
          _
      $region32: #{tpu_custom_call.1} parent=5 // pred_fallthru
        _
      %p524 = scmp.le.s32.totalorder 2, %s16
      // Predicated region
      $region49: #{tpu_custom_call.1} parent=5 // pred_check
        %p525 = pneg %p524
      $region50: #{tpu_custom_call.1} parent=5 // pred_check_branch
        %527 = sbr.rel (%p525) target = $region52
      $region51: #{tpu_custom_call.1} parent=5 // pred_region
        %s528 = ssub.s32 %s16, 2
        // Predicated region
        $region53: #{tpu_custom_call.1} parent=51 // pred_check
          %p529 = pneg %p113
        $region54: #{tpu_custom_call.1} parent=51 // pred_check_branch
          %531 = sbr.rel (%p529) target = $region56
        $region55: #{tpu_custom_call.1} parent=51 // pred_region
          %s532 = sand.u32 %s98, 1
          %s533 = scalar_lea.sflag [#allocation4], %s532
          %s534 = sand.u32 %s98, 1
          %s535 = smul.addr %s534, 128
          %s536 = scalar_lea.vmem [#allocation8], %s535
          %537 = dma.done %s533, 2048
        $region56: #{tpu_custom_call.1} parent=51 // pred_fallthru
          _
      $region52: #{tpu_custom_call.1} parent=5 // pred_fallthru
        _
    $region6: #{tpu_custom_call.1} parent=1 // loop_footer
      %s20 = sadd.s32 1, %s16
    $region7: #{tpu_custom_call.1} parent=1 // loop_footer_branch
      %15 = sbr.rel target = $region3
    $region8: #{tpu_custom_call.1} parent=1 // loop_exit
      _
    %538 = vsyncpa [#allocation3], 1
    %s539 = scalar_lea.sflag [#allocation3], 1
    %540 = vsyncpa %s539, 1
    %541 = vsyncpa [#allocation6], 1
    %542 = vsyncpa [#allocation4], 1
    %s543 = scalar_lea.sflag [#allocation4], 1
    %544 = vsyncpa %s543, 1

</llo_original>
